<compile_context>
chip_gen: v6e
topology: v6e:2x2x1
jax: 0.10.0
libtpu: 0.0.40
codegen_flags: <defaults>
</compile_context>

<pallas_src>
import functools

import jax
import jax.numpy as jnp
from jax import lax
from jax.experimental import pallas as pl
from jax.experimental.pallas import tpu as pltpu


def flash_causal_kernel(xq_ref, xk_ref, wq_ref, wk_ref, wv_ref, o_ref,
                        q_sc, m_sc, l_sc, acc_sc, *, scale, tq, tk):
    qi = pl.program_id(1)
    ki = pl.program_id(2)
    nk = pl.num_programs(2)

    # --- init (once per (batch, q-block)): project q with scale folded in ---
    @pl.when(ki == 0)
    def _init():
        q = jnp.dot(xq_ref[...], wq_ref[...],
                    preferred_element_type=jnp.float32)          # (tq, d_pad)
        q_sc[...] = q * scale
        m_sc[...] = jnp.full(m_sc.shape, -jnp.inf, dtype=jnp.float32)
        l_sc[...] = jnp.zeros(l_sc.shape, dtype=jnp.float32)
        acc_sc[...] = jnp.zeros(acc_sc.shape, dtype=jnp.float32)

    # --- skip kv blocks that are entirely above the causal diagonal ---
    @pl.when(ki * tk <= qi * tq + (tq - 1))
    def _compute():
        k = jnp.dot(xk_ref[...], wk_ref[...],
                    preferred_element_type=jnp.float32)          # (tk, d_pad)
        v = jnp.dot(xk_ref[...], wv_ref[...],
                    preferred_element_type=jnp.float32)          # (tk, d_pad)

        # scores = q @ k^T without an explicit transpose (contract last dims).
        s = lax.dot_general(q_sc[...], k, (((1,), (1,)), ((), ())),
                            preferred_element_type=jnp.float32)  # (tq, tk)

        # causal mask on absolute positions: col > row -> -inf
        row = qi * tq + lax.broadcasted_iota(jnp.int32, (tq, tk), 0)
        col = ki * tk + lax.broadcasted_iota(jnp.int32, (tq, tk), 1)
        s = jnp.where(col > row, -jnp.inf, s)

        # online softmax update (f32 throughout)
        m_prev = m_sc[...]
        m_new = jnp.maximum(m_prev, jnp.max(s, axis=-1, keepdims=True))
        alpha = jnp.exp(m_prev - m_new)
        p = jnp.exp(s - m_new)
        l_sc[...] = alpha * l_sc[...] + jnp.sum(p, axis=-1, keepdims=True)
        acc_sc[...] = alpha * acc_sc[...] + jnp.dot(
            p, v, preferred_element_type=jnp.float32)
        m_sc[...] = m_new

    # --- finalize: single normalization of the accumulator ---
    @pl.when(ki == nk - 1)
    def _finalize():
        # TODO(synk): nn.Dropout(p) on attn weights is identity in eval mode;
        # training-time stochastic dropout intentionally not applied.
        inv_l = pl.reciprocal(l_sc[...], approx=True)
        o_ref[...] = (acc_sc[...] * inv_l).astype(o_ref.dtype)


def causal_attention(x, w_query, w_key, w_value, *, block_q=128, block_k=128):
    """x: [B, T, d_in]; w_*: [d_in, d_out] (already transposed from torch layout)."""
    B, T, d_in = x.shape
    d_out = w_query.shape[1]
    scale = 1.0 / (d_out ** 0.5)   # keys.shape[-1] ** 0.5 in the torch module

    # Lane-dense last dim: pad d_out up to a multiple of 128 with zero columns
    # (zero columns do not change scores or the first d_out output columns).
    LANE = 128
    d_pad = ((d_out + LANE - 1) // LANE) * LANE
    if d_pad != d_out:
        pad = ((0, 0), (0, d_pad - d_out))
        w_query = jnp.pad(w_query, pad)
        w_key = jnp.pad(w_key, pad)
        w_value = jnp.pad(w_value, pad)

    # Block sizes: 128 when T divides evenly, otherwise fall back to full T
    # (full-extent blocks are always layout-legal).
    tq = block_q if T % block_q == 0 else T
    tk = block_k if T % block_k == 0 else T
    nq, nk = T // tq, T // tk

    kernel = functools.partial(flash_causal_kernel, scale=scale, tq=tq, tk=tk)

    itemsize = jnp.dtype(x.dtype).itemsize
    flops = 2 * B * (3 * T * d_in * d_pad + 2 * T * T * d_pad)
    bytes_accessed = (2 * B * T * d_in + 3 * d_in * d_pad + B * T * d_pad) * itemsize
    cost = pl.CostEstimate(flops=flops, transcendentals=B * T * T,
                           bytes_accessed=bytes_accessed)

    out = pl.pallas_call(
        kernel,
        out_shape=jax.ShapeDtypeStruct((B, T, d_pad), x.dtype),
        grid_spec=pltpu.PrefetchScalarGridSpec(
            num_scalar_prefetch=0,
            grid=(B, nq, nk),
            in_specs=[
                # x for the q rows of this block (batch dim squeezed)
                pl.BlockSpec((None, tq, d_in), lambda b, qi, ki: (b, qi, 0)),
                # x for the kv rows of this block
                pl.BlockSpec((None, tk, d_in), lambda b, qi, ki: (b, ki, 0)),
                # weights: index-invariant -> stay resident in VMEM
                pl.BlockSpec((d_in, d_pad), lambda b, qi, ki: (0, 0)),
                pl.BlockSpec((d_in, d_pad), lambda b, qi, ki: (0, 0)),
                pl.BlockSpec((d_in, d_pad), lambda b, qi, ki: (0, 0)),
            ],
            out_specs=pl.BlockSpec((None, tq, d_pad), lambda b, qi, ki: (b, qi, 0)),
            scratch_shapes=[
                pltpu.VMEM((tq, d_pad), jnp.float32),   # q (scale folded in)
                pltpu.VMEM((tq, 1), jnp.float32),       # running max m_i
                pltpu.VMEM((tq, 1), jnp.float32),       # running denom l_i
                pltpu.VMEM((tq, d_pad), jnp.float32),   # output accumulator
            ],
        ),
        compiler_params=pltpu.CompilerParams(
            dimension_semantics=("parallel", "parallel", "arbitrary"),
            vmem_limit_bytes=48 * 1024 * 1024,   # fits v7x's 64 MiB VMEM with headroom
        ),
        cost_estimate=cost,
    )(x, x, w_query, w_key, w_value)

    return out[..., :d_out] if d_pad != d_out else out


def reference(x, wq, wk, wv):
    q = x @ wq
    k = x @ wk
    v = x @ wv
    scores = jnp.einsum("btd,bsd->bts", q, k)
    T = x.shape[1]
    mask = jnp.triu(jnp.ones((T, T), bool), k=1)
    scores = jnp.where(mask[None], -jnp.inf, scores)
    attn = jax.nn.softmax(scores / (wq.shape[1] ** 0.5), axis=-1)
    return attn @ v


if __name__ == "__main__":
    key = jax.random.PRNGKey(0)
    B, T, d_in, d_out = 2, 8, 32, 16          # context_length == T

    kx, kq, kk, kv = jax.random.split(key, 4)
    x = jax.random.normal(kx, (B, T, d_in), dtype=jnp.float32)
    # deterministic "Linear" weights (no bias, qkv_bias=False), stored [d_in, d_out]
    w_query = jax.random.normal(kq, (d_in, d_out), dtype=jnp.float32) * 0.1
    w_key = jax.random.normal(kk, (d_in, d_out), dtype=jnp.float32) * 0.1
    w_value = jax.random.normal(kv, (d_in, d_out), dtype=jnp.float32) * 0.1

    out = causal_attention(x, w_query, w_key, w_value)
    out = jax.block_until_ready(out)

    ref = reference(x, w_query, w_key, w_value)
    assert out.shape == (B, T, d_out)
    # Tolerance accounts for the approximate EUP reciprocal in the finalize step.
    assert jnp.allclose(out, ref, atol=5e-3, rtol=5e-3), "mismatch vs reference"

    print("KERNEL_OK")
</pallas_src>

<mosaic_0001>
module attributes {stable_mosaic.version = 11 : i64} {
  func.func @flash_causal_kernel(%arg0: i32, %arg1: i32, %arg2: i32, %arg3: memref<1x8x32xf32, #tpu.memory_space<vmem>>, %arg4: memref<1x8x32xf32, #tpu.memory_space<vmem>>, %arg5: memref<32x128xf32, #tpu.memory_space<vmem>>, %arg6: memref<32x128xf32, #tpu.memory_space<vmem>>, %arg7: memref<32x128xf32, #tpu.memory_space<vmem>>, %arg8: memref<1x8x128xf32, #tpu.memory_space<vmem>>, %arg9: memref<8x128xf32, #tpu.memory_space<vmem>>, %arg10: memref<8x1xf32, #tpu.memory_space<vmem>>, %arg11: memref<8x1xf32, #tpu.memory_space<vmem>>, %arg12: memref<8x128xf32, #tpu.memory_space<vmem>>) attributes {dimension_semantics = [#tpu.dimension_semantics<parallel>, #tpu.dimension_semantics<parallel>, #tpu.dimension_semantics<arbitrary>], iteration_bounds = array<i64: 2, 1, 1>, scalar_prefetch = 0 : i64, scratch_operands = 4 : i64, tpu.core_type = #tpu.core_type<tc>, window_params = [{transform_indices = @transform_0, window_bounds = array<i64: 1, 8, 32>}, {transform_indices = @transform_1, window_bounds = array<i64: 1, 8, 32>}, {pipeline_mode = #tpu.pipeline_mode<synchronous>, transform_indices = @transform_2, window_bounds = array<i64: 32, 128>}, {pipeline_mode = #tpu.pipeline_mode<synchronous>, transform_indices = @transform_3, window_bounds = array<i64: 32, 128>}, {pipeline_mode = #tpu.pipeline_mode<synchronous>, transform_indices = @transform_4, window_bounds = array<i64: 32, 128>}, {transform_indices = @transform_5, window_bounds = array<i64: 1, 8, 128>}]} {
    %c0_i32 = arith.constant 0 : i32
    %0 = arith.cmpi eq, %arg2, %c0_i32 : i32
    %1 = arith.extui %0 : i1 to i32
    %c0_i32_0 = arith.constant 0 : i32
    %2 = arith.cmpi ne, %1, %c0_i32_0 : i32
    scf.if %2 {
      %c0 = arith.constant 0 : index
      %c0_5 = arith.constant 0 : index
      %c0_6 = arith.constant 0 : index
      %12 = vector.load %arg3[%c0, %c0_5, %c0_6] : memref<1x8x32xf32, #tpu.memory_space<vmem>>, vector<1x8x32xf32>
      %13 = vector.shape_cast %12 : vector<1x8x32xf32> to vector<8x32xf32>
      %c0_7 = arith.constant 0 : index
      %c0_8 = arith.constant 0 : index
      %14 = vector.load %arg5[%c0_7, %c0_8] : memref<32x128xf32, #tpu.memory_space<vmem>>, vector<32x128xf32>
      %cst = arith.constant dense<0.000000e+00> : vector<8x128xf32>
      %15 = tpu.matmul %13, %14, %cst {dimension_numbers = #tpu.dot_dimension_numbers<[1], [0], [0], [1], [0, 0, 1, 1], [], []>} : vector<8x32xf32>, vector<32x128xf32>, vector<8x128xf32> -> vector<8x128xf32>
      %cst_9 = arith.constant 2.500000e-01 : f32
      %16 = vector.broadcast %cst_9 : f32 to vector<8x128xf32>
      %17 = arith.mulf %15, %16 : vector<8x128xf32>
      %c0_10 = arith.constant 0 : index
      %c0_11 = arith.constant 0 : index
      %18 = vector.load %arg9[%c0_10, %c0_11] : memref<8x128xf32, #tpu.memory_space<vmem>>, vector<8x128xf32>
      tpu.vector_store %arg9[%c0_10, %c0_11], %17 {strides = array<i32>} : memref<8x128xf32, #tpu.memory_space<vmem>>, vector<8x128xf32>,
      %cst_12 = arith.constant 0xFF800000 : f32
      %19 = vector.broadcast %cst_12 : f32 to vector<8x1xf32>
      %c0_13 = arith.constant 0 : index
      %c0_14 = arith.constant 0 : index
      %20 = vector.load %arg10[%c0_13, %c0_14] : memref<8x1xf32, #tpu.memory_space<vmem>>, vector<8x1xf32>
      tpu.vector_store %arg10[%c0_13, %c0_14], %19 {strides = array<i32>} : memref<8x1xf32, #tpu.memory_space<vmem>>, vector<8x1xf32>,
      %cst_15 = arith.constant 0.000000e+00 : f32
      %21 = vector.broadcast %cst_15 : f32 to vector<8x1xf32>
      %c0_16 = arith.constant 0 : index
      %c0_17 = arith.constant 0 : index
      %22 = vector.load %arg11[%c0_16, %c0_17] : memref<8x1xf32, #tpu.memory_space<vmem>>, vector<8x1xf32>
      tpu.vector_store %arg11[%c0_16, %c0_17], %21 {strides = array<i32>} : memref<8x1xf32, #tpu.memory_space<vmem>>, vector<8x1xf32>,
      %cst_18 = arith.constant 0.000000e+00 : f32
      %23 = vector.broadcast %cst_18 : f32 to vector<8x128xf32>
      %c0_19 = arith.constant 0 : index
      %c0_20 = arith.constant 0 : index
      %24 = vector.load %arg12[%c0_19, %c0_20] : memref<8x128xf32, #tpu.memory_space<vmem>>, vector<8x128xf32>
      tpu.vector_store %arg12[%c0_19, %c0_20], %23 {strides = array<i32>} : memref<8x128xf32, #tpu.memory_space<vmem>>, vector<8x128xf32>,
    } else {
    }
    %c8_i32 = arith.constant 8 : i32
    %3 = arith.muli %arg2, %c8_i32 : i32
    %c8_i32_1 = arith.constant 8 : i32
    %4 = arith.muli %arg1, %c8_i32_1 : i32
    %c7_i32 = arith.constant 7 : i32
    %5 = arith.addi %4, %c7_i32 : i32
    %6 = arith.cmpi sle, %3, %5 : i32
    %7 = arith.extui %6 : i1 to i32
    %c0_i32_2 = arith.constant 0 : i32
    %8 = arith.cmpi ne, %7, %c0_i32_2 : i32
    scf.if %8 {
      %c0 = arith.constant 0 : index
      %c0_5 = arith.constant 0 : index
      %c0_6 = arith.constant 0 : index
      %12 = vector.load %arg4[%c0, %c0_5, %c0_6] : memref<1x8x32xf32, #tpu.memory_space<vmem>>, vector<1x8x32xf32>
      %13 = vector.shape_cast %12 : vector<1x8x32xf32> to vector<8x32xf32>
      %c0_7 = arith.constant 0 : index
      %c0_8 = arith.constant 0 : index
      %14 = vector.load %arg6[%c0_7, %c0_8] : memref<32x128xf32, #tpu.memory_space<vmem>>, vector<32x128xf32>
      %cst = arith.constant dense<0.000000e+00> : vector<8x128xf32>
      %15 = tpu.matmul %13, %14, %cst {dimension_numbers = #tpu.dot_dimension_numbers<[1], [0], [0], [1], [0, 0, 1, 1], [], []>} : vector<8x32xf32>, vector<32x128xf32>, vector<8x128xf32> -> vector<8x128xf32>
      %c0_9 = arith.constant 0 : index
      %c0_10 = arith.constant 0 : index
      %c0_11 = arith.constant 0 : index
      %16 = vector.load %arg4[%c0_9, %c0_10, %c0_11] : memref<1x8x32xf32, #tpu.memory_space<vmem>>, vector<1x8x32xf32>
      %17 = vector.shape_cast %16 : vector<1x8x32xf32> to vector<8x32xf32>
      %c0_12 = arith.constant 0 : index
      %c0_13 = arith.constant 0 : index
      %18 = vector.load %arg7[%c0_12, %c0_13] : memref<32x128xf32, #tpu.memory_space<vmem>>, vector<32x128xf32>
      %cst_14 = arith.constant dense<0.000000e+00> : vector<8x128xf32>
      %19 = tpu.matmul %17, %18, %cst_14 {dimension_numbers = #tpu.dot_dimension_numbers<[1], [0], [0], [1], [0, 0, 1, 1], [], []>} : vector<8x32xf32>, vector<32x128xf32>, vector<8x128xf32> -> vector<8x128xf32>
      %c0_15 = arith.constant 0 : index
      %c0_16 = arith.constant 0 : index
      %20 = vector.load %arg9[%c0_15, %c0_16] : memref<8x128xf32, #tpu.memory_space<vmem>>, vector<8x128xf32>
      %cst_17 = arith.constant dense<0.000000e+00> : vector<8x8xf32>
      %21 = tpu.matmul %20, %15, %cst_17 {dimension_numbers = #tpu.dot_dimension_numbers<[1], [1], [0], [0], [0, 0, 1, 0], [], []>} : vector<8x128xf32>, vector<8x128xf32>, vector<8x8xf32> -> vector<8x8xf32>
      %c8_i32_18 = arith.constant 8 : i32
      %22 = arith.muli %arg1, %c8_i32_18 : i32
      %23 = tpu.iota {dimensions = array<i32: 0>} : vector<8x8xi32>
      %24 = vector.broadcast %22 : i32 to vector<8x8xi32>
      %25 = arith.addi %24, %23 : vector<8x8xi32>
      %c8_i32_19 = arith.constant 8 : i32
      %26 = arith.muli %arg2, %c8_i32_19 : i32
      %27 = tpu.iota {dimensions = array<i32: 1>} : vector<8x8xi32>
      %28 = vector.broadcast %26 : i32 to vector<8x8xi32>
      %29 = arith.addi %28, %27 : vector<8x8xi32>
      %30 = arith.cmpi sgt, %29, %25 : vector<8x8xi32>
      %cst_20 = arith.constant 0xFF800000 : f32
      %31 = vector.broadcast %cst_20 : f32 to vector<8x8xf32>
      %32 = arith.select %30, %31, %21 : vector<8x8xi1>, vector<8x8xf32>
      %c0_21 = arith.constant 0 : index
      %c0_22 = arith.constant 0 : index
      %33 = vector.load %arg10[%c0_21, %c0_22] : memref<8x1xf32, #tpu.memory_space<vmem>>, vector<8x1xf32>
      %cst_23 = arith.constant dense<0xFF800000> : vector<8xf32>
      %34 = vector.multi_reduction <maximumf>, %32, %cst_23 [1] : vector<8x8xf32> to vector<8xf32>
      %35 = vector.shape_cast %34 : vector<8xf32> to vector<8x1xf32>
      %36 = arith.maximumf %33, %35 : vector<8x1xf32>
      %37 = arith.subf %33, %36 : vector<8x1xf32>
      %38 = math.exp %37 : vector<8x1xf32>
      %39 = vector.broadcast %36 : vector<8x1xf32> to vector<8x8xf32>
      %40 = arith.subf %32, %39 : vector<8x8xf32>
      %41 = math.exp %40 : vector<8x8xf32>
      %c0_24 = arith.constant 0 : index
      %c0_25 = arith.constant 0 : index
      %42 = vector.load %arg11[%c0_24, %c0_25] : memref<8x1xf32, #tpu.memory_space<vmem>>, vector<8x1xf32>
      %43 = arith.mulf %38, %42 : vector<8x1xf32>
      %cst_26 = arith.constant dense<0.000000e+00> : vector<8xf32>
      %44 = vector.multi_reduction <add>, %41, %cst_26 [1] : vector<8x8xf32> to vector<8xf32>
      %45 = vector.shape_cast %44 : vector<8xf32> to vector<8x1xf32>
      %46 = arith.addf %43, %45 : vector<8x1xf32>
      %c0_27 = arith.constant 0 : index
      %c0_28 = arith.constant 0 : index
      %47 = vector.load %arg11[%c0_27, %c0_28] : memref<8x1xf32, #tpu.memory_space<vmem>>, vector<8x1xf32>
      tpu.vector_store %arg11[%c0_27, %c0_28], %46 {strides = array<i32>} : memref<8x1xf32, #tpu.memory_space<vmem>>, vector<8x1xf32>,
      %c0_29 = arith.constant 0 : index
      %c0_30 = arith.constant 0 : index
      %48 = vector.load %arg12[%c0_29, %c0_30] : memref<8x128xf32, #tpu.memory_space<vmem>>, vector<8x128xf32>
      %49 = vector.broadcast %38 : vector<8x1xf32> to vector<8x128xf32>
      %50 = arith.mulf %49, %48 : vector<8x128xf32>
      %cst_31 = arith.constant dense<0.000000e+00> : vector<8x128xf32>
      %51 = tpu.matmul %41, %19, %cst_31 {dimension_numbers = #tpu.dot_dimension_numbers<[1], [0], [0], [1], [0, 0, 1, 1], [], []>} : vector<8x8xf32>, vector<8x128xf32>, vector<8x128xf32> -> vector<8x128xf32>
      %52 = arith.addf %50, %51 : vector<8x128xf32>
      %c0_32 = arith.constant 0 : index
      %c0_33 = arith.constant 0 : index
      %53 = vector.load %arg12[%c0_32, %c0_33] : memref<8x128xf32, #tpu.memory_space<vmem>>, vector<8x128xf32>
      tpu.vector_store %arg12[%c0_32, %c0_33], %52 {strides = array<i32>} : memref<8x128xf32, #tpu.memory_space<vmem>>, vector<8x128xf32>,
      %c0_34 = arith.constant 0 : index
      %c0_35 = arith.constant 0 : index
      %54 = vector.load %arg10[%c0_34, %c0_35] : memref<8x1xf32, #tpu.memory_space<vmem>>, vector<8x1xf32>
      tpu.vector_store %arg10[%c0_34, %c0_35], %36 {strides = array<i32>} : memref<8x1xf32, #tpu.memory_space<vmem>>, vector<8x1xf32>,
    } else {
    }
    %c0_i32_3 = arith.constant 0 : i32
    %9 = arith.cmpi eq, %arg2, %c0_i32_3 : i32
    %10 = arith.extui %9 : i1 to i32
    %c0_i32_4 = arith.constant 0 : i32
    %11 = arith.cmpi ne, %10, %c0_i32_4 : i32
    scf.if %11 {
      %c0 = arith.constant 0 : index
      %c0_5 = arith.constant 0 : index
      %12 = vector.load %arg11[%c0, %c0_5] : memref<8x1xf32, #tpu.memory_space<vmem>>, vector<8x1xf32>
      %13 = tpu.reciprocal %12 {approx = true} : vector<8x1xf32> -> vector<8x1xf32>
      %c0_6 = arith.constant 0 : index
      %c0_7 = arith.constant 0 : index
      %14 = vector.load %arg12[%c0_6, %c0_7] : memref<8x128xf32, #tpu.memory_space<vmem>>, vector<8x128xf32>
      %15 = vector.broadcast %13 : vector<8x1xf32> to vector<8x128xf32>
      %16 = arith.mulf %14, %15 : vector<8x128xf32>
      %c0_8 = arith.constant 0 : index
      %c0_9 = arith.constant 0 : index
      %c0_10 = arith.constant 0 : index
      %17 = vector.load %arg8[%c0_8, %c0_9, %c0_10] : memref<1x8x128xf32, #tpu.memory_space<vmem>>, vector<1x8x128xf32>
      %18 = vector.shape_cast %17 : vector<1x8x128xf32> to vector<8x128xf32>
      %19 = vector.shape_cast %16 : vector<8x128xf32> to vector<1x8x128xf32>
      tpu.vector_store %arg8[%c0_8, %c0_9, %c0_10], %19 {strides = array<i32>} : memref<1x8x128xf32, #tpu.memory_space<vmem>>, vector<1x8x128xf32>,
    } else {
    }
    return
  }
  func.func @transform_0(%arg0: i32, %arg1: i32, %arg2: i32) -> (i32, i32, i32) {
    %c0_i32 = arith.constant 0 : i32
    %c0_i32_0 = arith.constant 0 : i32
    return %arg0, %arg1, %c0_i32 : i32, i32, i32
  }
  func.func @transform_1(%arg0: i32, %arg1: i32, %arg2: i32) -> (i32, i32, i32) {
    %c0_i32 = arith.constant 0 : i32
    %c0_i32_0 = arith.constant 0 : i32
    return %arg0, %arg2, %c0_i32 : i32, i32, i32
  }
  func.func @transform_2(%arg0: i32, %arg1: i32, %arg2: i32) -> (i32, i32) {
    %c0_i32 = arith.constant 0 : i32
    %c0_i32_0 = arith.constant 0 : i32
    %c0_i32_1 = arith.constant 0 : i32
    return %c0_i32, %c0_i32_0 : i32, i32
  }
  func.func @transform_3(%arg0: i32, %arg1: i32, %arg2: i32) -> (i32, i32) {
    %c0_i32 = arith.constant 0 : i32
    %c0_i32_0 = arith.constant 0 : i32
    %c0_i32_1 = arith.constant 0 : i32
    return %c0_i32, %c0_i32_0 : i32, i32
  }
  func.func @transform_4(%arg0: i32, %arg1: i32, %arg2: i32) -> (i32, i32) {
    %c0_i32 = arith.constant 0 : i32
    %c0_i32_0 = arith.constant 0 : i32
    %c0_i32_1 = arith.constant 0 : i32
    return %c0_i32, %c0_i32_0 : i32, i32
  }
  func.func @transform_5(%arg0: i32, %arg1: i32, %arg2: i32) -> (i32, i32, i32) {
    %c0_i32 = arith.constant 0 : i32
    %c0_i32_0 = arith.constant 0 : i32
    return %arg0, %arg1, %c0_i32 : i32, i32, i32
  }
}

</mosaic_0001>

<llo_original>
// kernel: tpu_custom_call.1
$region0: #{tpu_custom_call.1}
  #allocation0 [shape = 'u32[]', space=smem, size = 0x4, offset = 0x4, fixed_abs, tag = 'smem constant byte address 0x4 - core index']
  #allocation1 [shape = 'u32[144,128]{1,0:T(1,128)}', space=vmem, size = 0x12000, scoped, tag = 'internal scratch']
  #allocation2 [shape = 'f32[8,128]{1,0:T(8,128)}', space=vmem, size = 0x1000, scoped, tag = 'scratch operand']
  #allocation3 [shape = 'f32[8,1]{1,0:T(8,128)}', space=vmem, size = 0x1000, scoped, tag = 'scratch operand']
  #allocation4 [shape = 'f32[8,1]{1,0:T(8,128)}', space=vmem, size = 0x1000, scoped, tag = 'scratch operand']
  #allocation5 [shape = 'f32[8,128]{1,0:T(8,128)}', space=vmem, size = 0x1000, scoped, tag = 'scratch operand']
  %s0 = inlined_call_operand.hbm [shape: f32[2,8,32], index: 0, kind: input, shape index: {}]
  %s1 = inlined_call_operand.hbm [shape: f32[2,8,32], index: 1, kind: input, shape index: {}]
  %s2 = inlined_call_operand.hbm [shape: f32[32,128], index: 2, kind: input, shape index: {}]
  %s3 = inlined_call_operand.hbm [shape: f32[32,128], index: 3, kind: input, shape index: {}]
  %s4 = inlined_call_operand.hbm [shape: f32[32,128], index: 4, kind: input, shape index: {}]
  %s5 = inlined_call_operand.hbm [shape: f32[2,8,128], index: 5, kind: output, shape index: {}]
  %s6 = sld [smem:[#allocation0]]
  $region85: #{tpu_custom_call.1} parent=0
    _
  %s8 = ssub.s32 1, %s6
  %s9 = scalar_select 0, %s8, %s6
  $region1: #{tpu_custom_call.1} parent=0
    #allocation6 [shape = 'u8[8192]{0}', space=vmem, size = 0x2000, scoped, tag = 'input window, operand 0']
    #allocation7 [shape = 's32[2]{0}', space=sflag, size = 0x8, scoped, tag = 'scoped memory for tpu_custom_call.1']
    #allocation8 [shape = 's32[2]{0}', space=sflag, size = 0x8, scoped, tag = 'scoped memory for tpu_custom_call.1']
    #allocation9 [shape = 'u8[8192]{0}', space=vmem, size = 0x2000, scoped, tag = 'input window, operand 1']
    #allocation10 [shape = 's32[2]{0}', space=sflag, size = 0x8, scoped, tag = 'scoped memory for tpu_custom_call.1']
    #allocation11 [shape = 'u8[16384]{0}', space=vmem, size = 0x4000, scoped, tag = 'input window, operand 2, single buffered']
    #allocation12 [shape = 'u8[16384]{0}', space=vmem, size = 0x4000, scoped, tag = 'input window, operand 3, single buffered']
    #allocation13 [shape = 's32[1]{0}', space=sflag, size = 0x4, scoped, tag = 'scoped memory for tpu_custom_call.1']
    #allocation14 [shape = 'u8[16384]{0}', space=vmem, size = 0x4000, scoped, tag = 'input window, operand 4, single buffered']
    #allocation15 [shape = 'u8[8192]{0}', space=vmem, size = 0x2000, scoped, tag = 'output window, operand 0']
    %10 = vsyncpa [#allocation7], 0
    %s11 = scalar_lea.sflag [#allocation7], 1
    %12 = vsyncpa %s11, 0
    %13 = vsyncpa [#allocation10], 0
    %s14 = scalar_lea.sflag [#allocation10], 1
    %15 = vsyncpa %s14, 0
    %16 = vsyncpa [#allocation13], 0
    %17 = vsyncpa [#allocation8], 0
    %s18 = scalar_lea.sflag [#allocation8], 1
    %19 = vsyncpa %s18, 0
    loop: start=0, step=1, limit=4
    $region2: #{tpu_custom_call.1} parent=1 // loop_pre_header
      _
    $region3: #{tpu_custom_call.1} parent=1 // loop_header
      %s21 = sphi 0, %s25
      %p22 = scmp.ge.s32.totalorder %s21, 4
      %s28 = sphi 0, %s47
      %s29 = sphi 0, %s43
      %s30 = sphi 0, %s39
      %s31 = sphi 0, %s28
      %s32 = sphi 0, %s29
      %s33 = sphi 0, %s30
      %s34 = sphi 0, %s31
      %s35 = sphi 0, %s32
      %s36 = sphi 0, %s33
      %s52 = sphi 0, %s54
      %s55 = sphi 0, %s52
      %s56 = sphi 0, %s55
      %s72 = sphi 0, %s56
      %s80 = sphi 0, %s82
      %s83 = sphi 0, %s80
      %s84 = sphi 0, %s83
      %s100 = sphi 0, %s84
      %s104 = sphi 0, %s104
      %s106 = sphi 0, %s104
      %s107 = sphi 0, %s106
      %s121 = sphi 0, %s107
      %s125 = sphi 0, %s125
      %s127 = sphi 0, %s125
      %s128 = sphi 0, %s127
      %s142 = sphi 0, %s128
      %s146 = sphi 0, %s146
      %s148 = sphi 0, %s146
      %s149 = sphi 0, %s148
      %s163 = sphi 0, %s149
      %s171 = sphi 0, %s173
      %s174 = sphi 0, %s171
      %s175 = sphi 0, %s174
      %s191 = sphi 0, %s175
    $region4: #{tpu_custom_call.1} parent=1 // loop_header_branch
      %24 = sbr.rel (%p22) target = $region8
    $region5: #{tpu_custom_call.1} parent=1 // loop_body
      %s26 = ssub.s32 %s21, 1
      %s27 = ssub.s32 %s21, 2
      %s37 = sadd.s32 1, %s30
      %p38 = scmp.ge.s32.totalorder %s37, 1
      %s39 = scalar_select %p38, 0, %s37
      %s40 = sadd.s32 1, %s29
      %s41 = scalar_select %p38, %s40, %s29
      %p42 = scmp.ge.s32.totalorder %s41, 1
      %s43 = scalar_select %p42, 0, %s41
      %s44 = sadd.s32 1, %s28
      %s45 = scalar_select %p42, %s44, %s28
      %p46 = scmp.ge.s32.totalorder %s45, 2
      %s47 = scalar_select %p46, 0, %s45
      %s48 = ssub.s32 %s28, %s47
      %s49 = ssub.s32 %s29, %s43
      %s50 = sor.u32 %s48, %s49
      %p51 = scmp.eq.s32.totalorder %s50, 0
      %s53 = sadd.s32 %s52, 1
      %s54 = scalar_select %p51, %s52, %s53
      %p57 = pneg %p51
      %p58 = scmp.eq.s32.totalorder %s21, 1
      %p59 = por %p57, %p58
      %p60 = scmp.ne.s32.totalorder %s52, %s55
      %p61 = scmp.eq.s32.totalorder %s21, 0
      %p62 = por %p60, %p61
      %p63 = scmp.ne.s32.totalorder %s52, %s55
      %p64 = scmp.eq.s32.totalorder %s26, 1
      %p65 = por %p63, %p64
      %p66 = scmp.ne.s32.totalorder %s55, %s56
      %p67 = scmp.eq.s32.totalorder %s26, 0
      %p68 = por %p66, %p67
      %p69 = scmp.ne.s32.totalorder %s55, %s56
      %p70 = scmp.eq.s32.totalorder %s27, 1
      %p71 = por %p69, %p70
      %p73 = scmp.ne.s32.totalorder %s56, %s72
      %p74 = scmp.eq.s32.totalorder %s27, 0
      %p75 = por %p73, %p74
      %s76 = ssub.s32 %s28, %s47
      %s77 = ssub.s32 %s30, %s39
      %s78 = sor.u32 %s76, %s77
      %p79 = scmp.eq.s32.totalorder %s78, 0
      %s81 = sadd.s32 %s80, 1
      %s82 = scalar_select %p79, %s80, %s81
      %p85 = pneg %p79
      %p86 = scmp.eq.s32.totalorder %s21, 1
      %p87 = por %p85, %p86
      %p88 = scmp.ne.s32.totalorder %s80, %s83
      %p89 = scmp.eq.s32.totalorder %s21, 0
      %p90 = por %p88, %p89
      %p91 = scmp.ne.s32.totalorder %s80, %s83
      %p92 = scmp.eq.s32.totalorder %s26, 1
      %p93 = por %p91, %p92
      %p94 = scmp.ne.s32.totalorder %s83, %s84
      %p95 = scmp.eq.s32.totalorder %s26, 0
      %p96 = por %p94, %p95
      %p97 = scmp.ne.s32.totalorder %s83, %s84
      %p98 = scmp.eq.s32.totalorder %s27, 1
      %p99 = por %p97, %p98
      %p101 = scmp.ne.s32.totalorder %s84, %s100
      %p102 = scmp.eq.s32.totalorder %s27, 0
      %p103 = por %p101, %p102
      %s105 = sadd.s32 %s104, 1
      %p108 = scmp.eq.s32.totalorder %s21, 1
      %p109 = scmp.ne.s32.totalorder %s104, %s106
      %p110 = scmp.eq.s32.totalorder %s21, 0
      %p111 = por %p109, %p110
      %p112 = scmp.ne.s32.totalorder %s104, %s106
      %p113 = scmp.eq.s32.totalorder %s26, 1
      %p114 = por %p112, %p113
      %p115 = scmp.ne.s32.totalorder %s106, %s107
      %p116 = scmp.eq.s32.totalorder %s26, 0
      %p117 = por %p115, %p116
      %p118 = scmp.ne.s32.totalorder %s106, %s107
      %p119 = scmp.eq.s32.totalorder %s27, 1
      %p120 = por %p118, %p119
      %p122 = scmp.ne.s32.totalorder %s107, %s121
      %p123 = scmp.eq.s32.totalorder %s27, 0
      %p124 = por %p122, %p123
      %s126 = sadd.s32 %s125, 1
      %p129 = scmp.eq.s32.totalorder %s21, 1
      %p130 = scmp.ne.s32.totalorder %s125, %s127
      %p131 = scmp.eq.s32.totalorder %s21, 0
      %p132 = por %p130, %p131
      %p133 = scmp.ne.s32.totalorder %s125, %s127
      %p134 = scmp.eq.s32.totalorder %s26, 1
      %p135 = por %p133, %p134
      %p136 = scmp.ne.s32.totalorder %s127, %s128
      %p137 = scmp.eq.s32.totalorder %s26, 0
      %p138 = por %p136, %p137
      %p139 = scmp.ne.s32.totalorder %s127, %s128
      %p140 = scmp.eq.s32.totalorder %s27, 1
      %p141 = por %p139, %p140
      %p143 = scmp.ne.s32.totalorder %s128, %s142
      %p144 = scmp.eq.s32.totalorder %s27, 0
      %p145 = por %p143, %p144
      %s147 = sadd.s32 %s146, 1
      %p150 = scmp.eq.s32.totalorder %s21, 1
      %p151 = scmp.ne.s32.totalorder %s146, %s148
      %p152 = scmp.eq.s32.totalorder %s21, 0
      %p153 = por %p151, %p152
      %p154 = scmp.ne.s32.totalorder %s146, %s148
      %p155 = scmp.eq.s32.totalorder %s26, 1
      %p156 = por %p154, %p155
      %p157 = scmp.ne.s32.totalorder %s148, %s149
      %p158 = scmp.eq.s32.totalorder %s26, 0
      %p159 = por %p157, %p158
      %p160 = scmp.ne.s32.totalorder %s148, %s149
      %p161 = scmp.eq.s32.totalorder %s27, 1
      %p162 = por %p160, %p161
      %p164 = scmp.ne.s32.totalorder %s149, %s163
      %p165 = scmp.eq.s32.totalorder %s27, 0
      %p166 = por %p164, %p165
      %s167 = ssub.s32 %s28, %s47
      %s168 = ssub.s32 %s29, %s43
      %s169 = sor.u32 %s167, %s168
      %p170 = scmp.eq.s32.totalorder %s169, 0
      %s172 = sadd.s32 %s171, 1
      %s173 = scalar_select %p170, %s171, %s172
      %p176 = pneg %p170
      %p177 = scmp.eq.s32.totalorder %s21, 1
      %p178 = por %p176, %p177
      %p179 = scmp.ne.s32.totalorder %s171, %s174
      %p180 = scmp.eq.s32.totalorder %s21, 0
      %p181 = por %p179, %p180
      %p182 = scmp.ne.s32.totalorder %s171, %s174
      %p183 = scmp.eq.s32.totalorder %s26, 1
      %p184 = por %p182, %p183
      %p185 = scmp.ne.s32.totalorder %s174, %s175
      %p186 = scmp.eq.s32.totalorder %s26, 0
      %p187 = por %p185, %p186
      %p188 = scmp.ne.s32.totalorder %s174, %s175
      %p189 = scmp.eq.s32.totalorder %s27, 1
      %p190 = por %p188, %p189
      %p192 = scmp.ne.s32.totalorder %s175, %s191
      %p193 = scmp.eq.s32.totalorder %s27, 0
      %p194 = por %p192, %p193
      %p195 = scmp.le.s32.totalorder 1, %s21
      %p196 = scmp.lt.s32.totalorder %s21, 3
      %p197 = pnand %p195, %p196
      %p198 = pneg %p197
      // Predicated region
      $region9: #{tpu_custom_call.1} parent=5 // pred_check
        _
      $region10: #{tpu_custom_call.1} parent=5 // pred_check_branch
        %200 = sbr.rel (%p197) target = $region12
      $region11: #{tpu_custom_call.1} parent=5 // pred_region
        %s201 = ssub.s32 %s21, 1
        // Predicated region
        $region13: #{tpu_custom_call.1} parent=11 // pred_check
          %p202 = pneg %p117
        $region14: #{tpu_custom_call.1} parent=11 // pred_check_branch
          %204 = sbr.rel (%p202) target = $region16
        $region15: #{tpu_custom_call.1} parent=11 // pred_region
          %s206 = ssub.s32 512, 512
          %207 = vsyncadd [#allocation10], %s206
          %s208 = sshll.u32 [#allocation11], 4
          %s209 = int_to_ptr.vmem [resolvable:$true] %s208
          %214 = dma.hbm_to_vmem [thread:$0]  %s2, 512, %s209, [#allocation10], 128, 128, 8
        $region16: #{tpu_custom_call.1} parent=11 // pred_fallthru
          _
        // Predicated region
        $region17: #{tpu_custom_call.1} parent=11 // pred_check
          %p215 = pneg %p138
        $region18: #{tpu_custom_call.1} parent=11 // pred_check_branch
          %217 = sbr.rel (%p215) target = $region20
        $region19: #{tpu_custom_call.1} parent=11 // pred_region
          %s219 = ssub.s32 512, 512
          %220 = vsyncadd [#allocation13], %s219
          %s221 = sshll.u32 [#allocation12], 4
          %s222 = int_to_ptr.vmem [resolvable:$true] %s221
          %227 = dma.hbm_to_vmem [thread:$0]  %s3, 512, %s222, [#allocation13], 128, 128, 8
        $region20: #{tpu_custom_call.1} parent=11 // pred_fallthru
          _
        // Predicated region
        $region21: #{tpu_custom_call.1} parent=11 // pred_check
          %p228 = pneg %p159
        $region22: #{tpu_custom_call.1} parent=11 // pred_check_branch
          %230 = sbr.rel (%p228) target = $region24
        $region23: #{tpu_custom_call.1} parent=11 // pred_region
          %s232 = ssub.s32 512, 512
          %233 = vsyncadd [#allocation13], %s232
          %s234 = sshll.u32 [#allocation14], 4
          %s235 = int_to_ptr.vmem [resolvable:$true] %s234
          %240 = dma.hbm_to_vmem [thread:$0]  %s4, 512, %s235, [#allocation13], 128, 128, 8
        $region24: #{tpu_custom_call.1} parent=11 // pred_fallthru
          _
      $region12: #{tpu_custom_call.1} parent=5 // pred_fallthru
        _
      %p241 = scmp.lt.s32.totalorder %s21, 2
      // Predicated region
      $region25: #{tpu_custom_call.1} parent=5 // pred_check
        %p242 = pneg %p241
      $region26: #{tpu_custom_call.1} parent=5 // pred_check_branch
        %244 = sbr.rel (%p242) target = $region28
      $region27: #{tpu_custom_call.1} parent=5 // pred_region
        // Predicated region
        $region29: #{tpu_custom_call.1} parent=27 // pred_check
          %p245 = pneg %p62
        $region30: #{tpu_custom_call.1} parent=27 // pred_check_branch
          %247 = sbr.rel (%p245) target = $region32
        $region31: #{tpu_custom_call.1} parent=27 // pred_region
          %s248 = sand.u32 %s52, 1
          %s249 = scalar_lea.sflag [#allocation7], %s248
          %s250 = sand.u32 %s52, 1
          %s251 = smul.addr %s250, 8
          %s252 = scalar_lea.vmem [#allocation6], %s251
          %s254 = ssub.s32 128, 128
          %255 = vsyncadd %s249, %s254
          %s256 = sadd.s32 %s29, %s28
          %s257 = smul.addr %s256, 128
          %s258 = scalar_lea.hbm %s0, %s257
          %s260 = sshll.u32 %s252, 4
          %s261 = int_to_ptr.vmem [resolvable:$true] %s260
          %263 = dma.hbm_to_vmem [thread:$0]  %s258, 128, %s261, %s249
        $region32: #{tpu_custom_call.1} parent=27 // pred_fallthru
          _
        // Predicated region
        $region33: #{tpu_custom_call.1} parent=27 // pred_check
          %p264 = pneg %p90
        $region34: #{tpu_custom_call.1} parent=27 // pred_check_branch
          %266 = sbr.rel (%p264) target = $region36
        $region35: #{tpu_custom_call.1} parent=27 // pred_region
          %s267 = sand.u32 %s21, 1
          %s268 = scalar_lea.sflag [#allocation10], %s267
          %s269 = sand.u32 %s80, 1
          %s270 = smul.addr %s269, 8
          %s271 = scalar_lea.vmem [#allocation9], %s270
          %s273 = ssub.s32 128, 128
          %274 = vsyncadd %s268, %s273
          %s275 = sadd.s32 %s30, %s28
          %s276 = smul.addr %s275, 128
          %s277 = scalar_lea.hbm %s1, %s276
          %s279 = sshll.u32 %s271, 4
          %s280 = int_to_ptr.vmem [resolvable:$true] %s279
          %282 = dma.hbm_to_vmem [thread:$0]  %s277, 128, %s280, %s268
        $region36: #{tpu_custom_call.1} parent=27 // pred_fallthru
          _
      $region28: #{tpu_custom_call.1} parent=5 // pred_fallthru
        _
      %p283 = scmp.le.s32.totalorder 1, %s21
      %p284 = scmp.lt.s32.totalorder %s21, 3
      %p285 = pnand %p283, %p284
      %p286 = pneg %p285
      // Predicated region
      $region37: #{tpu_custom_call.1} parent=5 // pred_check
        _
      $region38: #{tpu_custom_call.1} parent=5 // pred_check_branch
        %288 = sbr.rel (%p285) target = $region40
      $region39: #{tpu_custom_call.1} parent=5 // pred_region
        %s289 = ssub.s32 %s21, 1
        %s290 = sand.u32 %s55, 1
        %s291 = scalar_lea.sflag [#allocation7], %s290
        %s292 = sand.u32 %s55, 1
        %s293 = smul.addr %s292, 8
        %s294 = scalar_lea.vmem [#allocation6], %s293
        // Predicated region
        $region41: #{tpu_custom_call.1} parent=39 // pred_check
          %p295 = pneg %p68
        $region42: #{tpu_custom_call.1} parent=39 // pred_check_branch
          %297 = sbr.rel (%p295) target = $region44
        $region43: #{tpu_custom_call.1} parent=39 // pred_region
          %298 = dma.done %s291, 128
        $region44: #{tpu_custom_call.1} parent=39 // pred_fallthru
          _
        %s299 = sand.u32 %s26, 1
        %s300 = scalar_lea.sflag [#allocation10], %s299
        %s301 = sand.u32 %s83, 1
        %s302 = smul.addr %s301, 8
        %s303 = scalar_lea.vmem [#allocation9], %s302
        // Predicated region
        $region45: #{tpu_custom_call.1} parent=39 // pred_check
          %p304 = pneg %p96
        $region46: #{tpu_custom_call.1} parent=39 // pred_check_branch
          %306 = sbr.rel (%p304) target = $region48
        $region47: #{tpu_custom_call.1} parent=39 // pred_region
          %307 = dma.done %s300, 128
        $region48: #{tpu_custom_call.1} parent=39 // pred_fallthru
          _
        // Predicated region
        $region49: #{tpu_custom_call.1} parent=39 // pred_check
          %p308 = pneg %p117
        $region50: #{tpu_custom_call.1} parent=39 // pred_check_branch
          %310 = sbr.rel (%p308) target = $region52
        $region51: #{tpu_custom_call.1} parent=39 // pred_region
          %311 = dma.done [#allocation10], 512
        $region52: #{tpu_custom_call.1} parent=39 // pred_fallthru
          _
        // Predicated region
        $region53: #{tpu_custom_call.1} parent=39 // pred_check
          %p312 = pneg %p138
        $region54: #{tpu_custom_call.1} parent=39 // pred_check_branch
          %314 = sbr.rel (%p312) target = $region56
        $region55: #{tpu_custom_call.1} parent=39 // pred_region
          %315 = dma.done [#allocation13], 512
        $region56: #{tpu_custom_call.1} parent=39 // pred_fallthru
          _
        // Predicated region
        $region57: #{tpu_custom_call.1} parent=39 // pred_check
          %p316 = pneg %p159
        $region58: #{tpu_custom_call.1} parent=39 // pred_check_branch
          %318 = sbr.rel (%p316) target = $region60
        $region59: #{tpu_custom_call.1} parent=39 // pred_region
          %319 = dma.done [#allocation13], 512
        $region60: #{tpu_custom_call.1} parent=39 // pred_fallthru
          _
        %s320 = sand.u32 %s55, 1
        %s321 = scalar_lea.sflag [#allocation7], %s320
        %s322 = sand.u32 %s55, 1
        %s323 = smul.addr %s322, 8
        %s324 = scalar_lea.vmem [#allocation6], %s323
        %p325 = pneg %p68
        %p326 = pneg %p65
        %s327 = sand.u32 %s26, 1
        %s328 = scalar_lea.sflag [#allocation10], %s327
        %s329 = sand.u32 %s83, 1
        %s330 = smul.addr %s329, 8
        %s331 = scalar_lea.vmem [#allocation9], %s330
        %p332 = pneg %p96
        %p333 = pneg %p93
        %p334 = pneg %p117
        %p335 = pneg %p114
        %p336 = pneg %p138
        %p337 = pneg %p135
        %p338 = pneg %p159
        %p339 = pneg %p156
        %p340 = pneg %p187
        %p341 = pneg %p184
        %s342 = sand.u32 %s174, 1
        %s343 = scalar_lea.sflag [#allocation8], %s342
        %s344 = sand.u32 %s174, 1
        %s345 = smul.addr %s344, 8
        %s346 = scalar_lea.vmem [#allocation15], %s345
        %p347 = scmp.eq.s32.totalorder %s33, 0
        // Predicated region
        $region61: #{tpu_custom_call.1} parent=39 // pred_check
          %p348 = pneg %p347
        $region62: #{tpu_custom_call.1} parent=39 // pred_check_branch
          %350 = sbr.rel (%p348) target = $region64
        $region63: #{tpu_custom_call.1} parent=39 // pred_region
          %v351 = vld [vmem:[%s294] sm:$0xff]
          %v352 = vld [vmem:[#allocation11] sm:$0xff]
          %v353 = vld [vmem:[#allocation11 + $0x8] sm:$0xff]
          %v354 = vld [vmem:[#allocation11 + $0x10] sm:$0xff]
          %v355 = vld [vmem:[#allocation11 + $0x18] sm:$0xff]
          %vm356 = vcmask 261120
          %v358 = vsel %vm356, %v351, 0
          %360 = vmatprep.subr.mxu0 0.0
          %361 = vmatpush1.msra.mxu0 0.0
          %362 = vmatprep.subr.mxu0 0.0
          %363 = vmatpush1.msra.mxu0 0.0
          %364 = vmatprep.subr.mxu0 0.0
          %365 = vmatpush1.msra.mxu0 0.0
          %366 = vmatprep.subr.mxu0 0.0
          %367 = vmatpush1.msra.mxu0 0.0
          %368 = vmatprep.subr.mxu0 0.0
          %369 = vmatpush1.msra.mxu0 0.0
          %370 = vmatprep.subr.mxu0 0.0
          %371 = vmatpush1.msra.mxu0 0.0
          %372 = vmatprep.subr.mxu0 0.0
          %373 = vmatpush1.msra.mxu0 0.0
          %374 = vmatprep.subr.mxu0 0.0
          %375 = vmatpush1.msra.mxu0 0.0
          %376 = vmatprep.subr.mxu0 0.0
          %377 = vmatpush1.msra.mxu0 0.0
          %378 = vmatprep.subr.mxu0 0.0
          %379 = vmatpush1.msra.mxu0 0.0
          %380 = vmatprep.subr.mxu0 0.0
          %381 = vmatpush1.msra.mxu0 0.0
          %382 = vmatprep.subr.mxu0 0.0
          %383 = vmatpush1.msra.mxu0 0.0
          %384 = vmatprep.subr.mxu0 0.0
          %385 = vmatpush1.msra.mxu0 %v355
          %386 = vmatprep.subr.mxu0 0.0
          %387 = vmatpush1.msra.mxu0 %v354
          %388 = vmatprep.subr.mxu0 0.0
          %389 = vmatpush1.msra.mxu0 %v353
          %390 = vmatprep.subr.mxu0 0.0
          %391 = vmatpush1.msra.mxu0 %v352
          %392 = vmatprep.subr.mxu0 0.0
          %393 = vmatpush2.msra.mxu0 0.0
          %394 = vmatprep.subr.mxu0 0.0
          %395 = vmatpush2.msra.mxu0 0.0
          %396 = vmatprep.subr.mxu0 0.0
          %397 = vmatpush2.msra.mxu0 0.0
          %398 = vmatprep.subr.mxu0 0.0
          %399 = vmatpush2.msra.mxu0 0.0
          %400 = vmatprep.subr.mxu0 0.0
          %401 = vmatpush2.msra.mxu0 0.0
          %402 = vmatprep.subr.mxu0 0.0
          %403 = vmatpush2.msra.mxu0 0.0
          %404 = vmatprep.subr.mxu0 0.0
          %405 = vmatpush2.msra.mxu0 0.0
          %406 = vmatprep.subr.mxu0 0.0
          %407 = vmatpush2.msra.mxu0 0.0
          %408 = vmatprep.subr.mxu0 0.0
          %409 = vmatpush2.msra.mxu0 0.0
          %410 = vmatprep.subr.mxu0 0.0
          %411 = vmatpush2.msra.mxu0 0.0
          %412 = vmatprep.subr.mxu0 0.0
          %413 = vmatpush2.msra.mxu0 0.0
          %414 = vmatprep.subr.mxu0 0.0
          %415 = vmatpush2.msra.mxu0 0.0
          %416 = vmatprep.subr.mxu0 0.0
          %417 = vmatpush2.msra.mxu0 0.0
          %418 = vmatprep.subr.mxu0 0.0
          %419 = vmatpush2.msra.mxu0 0.0
          %420 = vmatprep.subr.mxu0 0.0
          %421 = vmatpush2.msra.mxu0 0.0
          %422 = vmatprep.subr.mxu0 0.0
          %423 = vmatpush2.msra.mxu0 0.0
          %424 = vmatprep.mubr.f32.mxu0 0.0
          %425 = vmatmul.mubr.f32.gmra.mxu0 %v358
          %v426 = vpop.f32.mrf.mxu0
          %v427 = vadd.f32 0.0, %v426
          %v428 = vpop.f32.mrf.mxu0
          %429 = vdwg.mxu0
          %v430 = vmul.f32 %v427, 0.25
          %431 = vst [vmem:[#allocation2] sm:$0xff] %v430
          %vm432 = vcmask 7168
          %433 = vst.msk [vmem:[#allocation3] sm:$0xff] %vm432, -inf
          %434 = vst.msk [vmem:[#allocation4] sm:$0xff] %vm432, 0.0
          %435 = vst [vmem:[#allocation5] sm:$0xff] 0.0
        $region64: #{tpu_custom_call.1} parent=39 // pred_fallthru
          _
        %s436 = smul.u32 %s33, 8
        %s437 = smul.u32 %s32, 8
        %s438 = sadd.s32 %s437, 7
        %p439 = scmp.le.s32.totalorder %s436, %s438
        // Predicated region
        $region65: #{tpu_custom_call.1} parent=39 // pred_check
          %p440 = pneg %p439
        $region66: #{tpu_custom_call.1} parent=39 // pred_check_branch
          %442 = sbr.rel (%p440) target = $region68
        $region67: #{tpu_custom_call.1} parent=39 // pred_region
          %v443 = vld [vmem:[%s303] sm:$0xff]
          %v444 = vld [vmem:[#allocation12] sm:$0xff]
          %v445 = vld [vmem:[#allocation12 + $0x8] sm:$0xff]
          %v446 = vld [vmem:[#allocation12 + $0x10] sm:$0xff]
          %v447 = vld [vmem:[#allocation12 + $0x18] sm:$0xff]
          %vm448 = vcmask 261120
          %v450 = vsel %vm448, %v443, 0
          %452 = vmatprep.subr.mxu0 0.0
          %453 = vmatpush1.msra.mxu0 0.0
          %454 = vmatprep.subr.mxu0 0.0
          %455 = vmatpush1.msra.mxu0 0.0
          %456 = vmatprep.subr.mxu0 0.0
          %457 = vmatpush1.msra.mxu0 0.0
          %458 = vmatprep.subr.mxu0 0.0
          %459 = vmatpush1.msra.mxu0 0.0
          %460 = vmatprep.subr.mxu0 0.0
          %461 = vmatpush1.msra.mxu0 0.0
          %462 = vmatprep.subr.mxu0 0.0
          %463 = vmatpush1.msra.mxu0 0.0
          %464 = vmatprep.subr.mxu0 0.0
          %465 = vmatpush1.msra.mxu0 0.0
          %466 = vmatprep.subr.mxu0 0.0
          %467 = vmatpush1.msra.mxu0 0.0
          %468 = vmatprep.subr.mxu0 0.0
          %469 = vmatpush1.msra.mxu0 0.0
          %470 = vmatprep.subr.mxu0 0.0
          %471 = vmatpush1.msra.mxu0 0.0
          %472 = vmatprep.subr.mxu0 0.0
          %473 = vmatpush1.msra.mxu0 0.0
          %474 = vmatprep.subr.mxu0 0.0
          %475 = vmatpush1.msra.mxu0 0.0
          %476 = vmatprep.subr.mxu0 0.0
          %477 = vmatpush1.msra.mxu0 %v447
          %478 = vmatprep.subr.mxu0 0.0
          %479 = vmatpush1.msra.mxu0 %v446
          %480 = vmatprep.subr.mxu0 0.0
          %481 = vmatpush1.msra.mxu0 %v445
          %482 = vmatprep.subr.mxu0 0.0
          %483 = vmatpush1.msra.mxu0 %v444
          %484 = vmatprep.subr.mxu0 0.0
          %485 = vmatpush2.msra.mxu0 0.0
          %486 = vmatprep.subr.mxu0 0.0
          %487 = vmatpush2.msra.mxu0 0.0
          %488 = vmatprep.subr.mxu0 0.0
          %489 = vmatpush2.msra.mxu0 0.0
          %490 = vmatprep.subr.mxu0 0.0
          %491 = vmatpush2.msra.mxu0 0.0
          %492 = vmatprep.subr.mxu0 0.0
          %493 = vmatpush2.msra.mxu0 0.0
          %494 = vmatprep.subr.mxu0 0.0
          %495 = vmatpush2.msra.mxu0 0.0
          %496 = vmatprep.subr.mxu0 0.0
          %497 = vmatpush2.msra.mxu0 0.0
          %498 = vmatprep.subr.mxu0 0.0
          %499 = vmatpush2.msra.mxu0 0.0
          %500 = vmatprep.subr.mxu0 0.0
          %501 = vmatpush2.msra.mxu0 0.0
          %502 = vmatprep.subr.mxu0 0.0
          %503 = vmatpush2.msra.mxu0 0.0
          %504 = vmatprep.subr.mxu0 0.0
          %505 = vmatpush2.msra.mxu0 0.0
          %506 = vmatprep.subr.mxu0 0.0
          %507 = vmatpush2.msra.mxu0 0.0
          %508 = vmatprep.subr.mxu0 0.0
          %509 = vmatpush2.msra.mxu0 0.0
          %510 = vmatprep.subr.mxu0 0.0
          %511 = vmatpush2.msra.mxu0 0.0
          %512 = vmatprep.subr.mxu0 0.0
          %513 = vmatpush2.msra.mxu0 0.0
          %514 = vmatprep.subr.mxu0 0.0
          %515 = vmatpush2.msra.mxu0 0.0
          %516 = vmatprep.mubr.f32.mxu0 0.0
          %517 = vmatmul.mubr.f32.gmra.mxu0 %v450
          %v518 = vpop.f32.mrf.mxu0
          %v519 = vadd.f32 0.0, %v518
          %v520 = vpop.f32.mrf.mxu0
          %521 = vdwg.mxu0
          %v522 = vld [vmem:[#allocation14] sm:$0xff]
          %v523 = vld [vmem:[#allocation14 + $0x8] sm:$0xff]
          %v524 = vld [vmem:[#allocation14 + $0x10] sm:$0xff]
          %v525 = vld [vmem:[#allocation14 + $0x18] sm:$0xff]
          %526 = vmatprep.subr.mxu0 0.0
          %527 = vmatpush1.msra.mxu0 0.0
          %528 = vmatprep.subr.mxu0 0.0
          %529 = vmatpush1.msra.mxu0 0.0
          %530 = vmatprep.subr.mxu0 0.0
          %531 = vmatpush1.msra.mxu0 0.0
          %532 = vmatprep.subr.mxu0 0.0
          %533 = vmatpush1.msra.mxu0 0.0
          %534 = vmatprep.subr.mxu0 0.0
          %535 = vmatpush1.msra.mxu0 0.0
          %536 = vmatprep.subr.mxu0 0.0
          %537 = vmatpush1.msra.mxu0 0.0
          %538 = vmatprep.subr.mxu0 0.0
          %539 = vmatpush1.msra.mxu0 0.0
          %540 = vmatprep.subr.mxu0 0.0
          %541 = vmatpush1.msra.mxu0 0.0
          %542 = vmatprep.subr.mxu0 0.0
          %543 = vmatpush1.msra.mxu0 0.0
          %544 = vmatprep.subr.mxu0 0.0
          %545 = vmatpush1.msra.mxu0 0.0
          %546 = vmatprep.subr.mxu0 0.0
          %547 = vmatpush1.msra.mxu0 0.0
          %548 = vmatprep.subr.mxu0 0.0
          %549 = vmatpush1.msra.mxu0 0.0
          %550 = vmatprep.subr.mxu0 0.0
          %551 = vmatpush1.msra.mxu0 %v525
          %552 = vmatprep.subr.mxu0 0.0
          %553 = vmatpush1.msra.mxu0 %v524
          %554 = vmatprep.subr.mxu0 0.0
          %555 = vmatpush1.msra.mxu0 %v523
          %556 = vmatprep.subr.mxu0 0.0
          %557 = vmatpush1.msra.mxu0 %v522
          %558 = vmatprep.subr.mxu0 0.0
          %559 = vmatpush2.msra.mxu0 0.0
          %560 = vmatprep.subr.mxu0 0.0
          %561 = vmatpush2.msra.mxu0 0.0
          %562 = vmatprep.subr.mxu0 0.0
          %563 = vmatpush2.msra.mxu0 0.0
          %564 = vmatprep.subr.mxu0 0.0
          %565 = vmatpush2.msra.mxu0 0.0
          %566 = vmatprep.subr.mxu0 0.0
          %567 = vmatpush2.msra.mxu0 0.0
          %568 = vmatprep.subr.mxu0 0.0
          %569 = vmatpush2.msra.mxu0 0.0
          %570 = vmatprep.subr.mxu0 0.0
          %571 = vmatpush2.msra.mxu0 0.0
          %572 = vmatprep.subr.mxu0 0.0
          %573 = vmatpush2.msra.mxu0 0.0
          %574 = vmatprep.subr.mxu0 0.0
          %575 = vmatpush2.msra.mxu0 0.0
          %576 = vmatprep.subr.mxu0 0.0
          %577 = vmatpush2.msra.mxu0 0.0
          %578 = vmatprep.subr.mxu0 0.0
          %579 = vmatpush2.msra.mxu0 0.0
          %580 = vmatprep.subr.mxu0 0.0
          %581 = vmatpush2.msra.mxu0 0.0
          %582 = vmatprep.subr.mxu0 0.0
          %583 = vmatpush2.msra.mxu0 0.0
          %584 = vmatprep.subr.mxu0 0.0
          %585 = vmatpush2.msra.mxu0 0.0
          %586 = vmatprep.subr.mxu0 0.0
          %587 = vmatpush2.msra.mxu0 0.0
          %588 = vmatprep.subr.mxu0 0.0
          %589 = vmatpush2.msra.mxu0 0.0
          %590 = vmatprep.mubr.f32.mxu0 0.0
          %591 = vmatmul.mubr.f32.gmra.mxu0 %v450
          %v592 = vpop.f32.mrf.mxu0
          %v593 = vadd.f32 0.0, %v592
          %v594 = vpop.f32.mrf.mxu0
          %595 = vdwg.mxu0
          %v596 = vld [vmem:[#allocation2] sm:$0xff]
          %597 = vmatprep.subr.mxu0 0.0
          %598 = vmatpush1.xpose.msra.mxu0 0.0
          %599 = vmatprep.subr.mxu0 0.0
          %600 = vmatpush1.xpose.msra.mxu0 0.0
          %601 = vmatprep.subr.mxu0 0.0
          %602 = vmatpush1.xpose.msra.mxu0 0.0
          %603 = vmatprep.subr.mxu0 0.0
          %604 = vmatpush1.xpose.msra.mxu0 0.0
          %605 = vmatprep.subr.mxu0 0.0
          %606 = vmatpush1.xpose.msra.mxu0 0.0
          %607 = vmatprep.subr.mxu0 0.0
          %608 = vmatpush1.xpose.msra.mxu0 0.0
          %609 = vmatprep.subr.mxu0 0.0
          %610 = vmatpush1.xpose.msra.mxu0 0.0
          %611 = vmatprep.subr.mxu0 0.0
          %612 = vmatpush1.xpose.msra.mxu0 0.0
          %613 = vmatprep.subr.mxu0 0.0
          %614 = vmatpush1.xpose.msra.mxu0 0.0
          %615 = vmatprep.subr.mxu0 0.0
          %616 = vmatpush1.xpose.msra.mxu0 0.0
          %617 = vmatprep.subr.mxu0 0.0
          %618 = vmatpush1.xpose.msra.mxu0 0.0
          %619 = vmatprep.subr.mxu0 0.0
          %620 = vmatpush1.xpose.msra.mxu0 0.0
          %621 = vmatprep.subr.mxu0 0.0
          %622 = vmatpush1.xpose.msra.mxu0 0.0
          %623 = vmatprep.subr.mxu0 0.0
          %624 = vmatpush1.xpose.msra.mxu0 0.0
          %625 = vmatprep.subr.mxu0 0.0
          %626 = vmatpush1.xpose.msra.mxu0 0.0
          %627 = vmatprep.subr.mxu0 0.0
          %628 = vmatpush1.xpose.msra.mxu0 %v519
          %629 = vmatprep.subr.mxu0 0.0
          %630 = vmatpush2.xpose.msra.mxu0 0.0
          %631 = vmatprep.subr.mxu0 0.0
          %632 = vmatpush2.xpose.msra.mxu0 0.0
          %633 = vmatprep.subr.mxu0 0.0
          %634 = vmatpush2.xpose.msra.mxu0 0.0
          %635 = vmatprep.subr.mxu0 0.0
          %636 = vmatpush2.xpose.msra.mxu0 0.0
          %637 = vmatprep.subr.mxu0 0.0
          %638 = vmatpush2.xpose.msra.mxu0 0.0
          %639 = vmatprep.subr.mxu0 0.0
          %640 = vmatpush2.xpose.msra.mxu0 0.0
          %641 = vmatprep.subr.mxu0 0.0
          %642 = vmatpush2.xpose.msra.mxu0 0.0
          %643 = vmatprep.subr.mxu0 0.0
          %644 = vmatpush2.xpose.msra.mxu0 0.0
          %645 = vmatprep.subr.mxu0 0.0
          %646 = vmatpush2.xpose.msra.mxu0 0.0
          %647 = vmatprep.subr.mxu0 0.0
          %648 = vmatpush2.xpose.msra.mxu0 0.0
          %649 = vmatprep.subr.mxu0 0.0
          %650 = vmatpush2.xpose.msra.mxu0 0.0
          %651 = vmatprep.subr.mxu0 0.0
          %652 = vmatpush2.xpose.msra.mxu0 0.0
          %653 = vmatprep.subr.mxu0 0.0
          %654 = vmatpush2.xpose.msra.mxu0 0.0
          %655 = vmatprep.subr.mxu0 0.0
          %656 = vmatpush2.xpose.msra.mxu0 0.0
          %657 = vmatprep.subr.mxu0 0.0
          %658 = vmatpush2.xpose.msra.mxu0 0.0
          %659 = vmatprep.subr.mxu0 0.0
          %660 = vmatpush2.xpose.msra.mxu0 0.0
          %661 = vmatprep.mubr.f32.mxu0 0.0
          %662 = vmatmul.mubr.f32.gmra.mxu0 %v596
          %v663 = vpop.f32.mrf.mxu0
          %v664 = vadd.f32 0.0, %v663
          %v665 = vpop.f32.mrf.mxu0
          %666 = vdwg.mxu0
          %v667 = vlaneseq
          %v668 = vshrl.u32 %v667, 7
          %v669 = vstv %s437
          %v670 = vadd.s32 %v669, %v668
          %v671 = vlaneseq
          %v672 = vand.u32 %v671, 127
          %v673 = vstv %s436
          %v674 = vadd.s32 %v673, %v672
          %vm675 = vcmp.gt.s32.totalorder %v674, %v670
          %v676 = vsel %vm675, -inf, %v664
          %v677 = vld [vmem:[#allocation3] sm:$0xff]
          %vm678 = vcmask 64512
          %v679 = vsel %vm678, %v676, -inf
          %680 = vmax.xlane.f32.xlu0 %v679
          %v681 = vpop.xlane.xlu0 %680
          %v682 = vmax.f32 %v677, %v681
          %v683 = vsub.f32 %v677, %v682
          %v684 = vmul.f32 %v683, 1.442695
          %v685 = vpow.pop %v684
          %687 = vset.pattern.permute.xlu0 0
          %688 = vperm.xlu0 %687, %v682
          %v689 = vpop.permute.xlu0 %688
          %v691 = vsub.f32 %v676, %v689
          %v692 = vmul.f32 %v691, 1.442695
          %v693 = vpow.pop %v692
          %v694 = vld [vmem:[#allocation4] sm:$0xff]
          %v695 = vmul.f32 %v685, %v694
          %v696 = vsel %vm678, %v693, 0.0
          %697 = vadd.xlane.f32.xlu0 %v696
          %v698 = vpop.xlane.xlu0 %697
          %v699 = vadd.f32 %v695, %v698
          %vm700 = vcmask 7168
          %701 = vst.msk [vmem:[#allocation4] sm:$0xff] %vm700, %v699
          %v702 = vld [vmem:[#allocation5] sm:$0xff]
          %704 = vset.pattern.permute.xlu0 0
          %705 = vperm.xlu0 %704, %v685
          %v706 = vpop.permute.xlu0 %705
          %v708 = vmul.f32 %v706, %v702
          %v710 = vsel %vm678, %v693, 0
          %712 = vmatprep.subr.mxu0 0.0
          %713 = vmatpush1.msra.mxu0 0.0
          %714 = vmatprep.subr.mxu0 0.0
          %715 = vmatpush1.msra.mxu0 0.0
          %716 = vmatprep.subr.mxu0 0.0
          %717 = vmatpush1.msra.mxu0 0.0
          %718 = vmatprep.subr.mxu0 0.0
          %719 = vmatpush1.msra.mxu0 0.0
          %720 = vmatprep.subr.mxu0 0.0
          %721 = vmatpush1.msra.mxu0 0.0
          %722 = vmatprep.subr.mxu0 0.0
          %723 = vmatpush1.msra.mxu0 0.0
          %724 = vmatprep.subr.mxu0 0.0
          %725 = vmatpush1.msra.mxu0 0.0
          %726 = vmatprep.subr.mxu0 0.0
          %727 = vmatpush1.msra.mxu0 0.0
          %728 = vmatprep.subr.mxu0 0.0
          %729 = vmatpush1.msra.mxu0 0.0
          %730 = vmatprep.subr.mxu0 0.0
          %731 = vmatpush1.msra.mxu0 0.0
          %732 = vmatprep.subr.mxu0 0.0
          %733 = vmatpush1.msra.mxu0 0.0
          %734 = vmatprep.subr.mxu0 0.0
          %735 = vmatpush1.msra.mxu0 0.0
          %736 = vmatprep.subr.mxu0 0.0
          %737 = vmatpush1.msra.mxu0 0.0
          %738 = vmatprep.subr.mxu0 0.0
          %739 = vmatpush1.msra.mxu0 0.0
          %740 = vmatprep.subr.mxu0 0.0
          %741 = vmatpush1.msra.mxu0 0.0
          %742 = vmatprep.subr.mxu0 0.0
          %743 = vmatpush1.msra.mxu0 %v593
          %744 = vmatprep.subr.mxu0 0.0
          %745 = vmatpush2.msra.mxu0 0.0
          %746 = vmatprep.subr.mxu0 0.0
          %747 = vmatpush2.msra.mxu0 0.0
          %748 = vmatprep.subr.mxu0 0.0
          %749 = vmatpush2.msra.mxu0 0.0
          %750 = vmatprep.subr.mxu0 0.0
          %751 = vmatpush2.msra.mxu0 0.0
          %752 = vmatprep.subr.mxu0 0.0
          %753 = vmatpush2.msra.mxu0 0.0
          %754 = vmatprep.subr.mxu0 0.0
          %755 = vmatpush2.msra.mxu0 0.0
          %756 = vmatprep.subr.mxu0 0.0
          %757 = vmatpush2.msra.mxu0 0.0
          %758 = vmatprep.subr.mxu0 0.0
          %759 = vmatpush2.msra.mxu0 0.0
          %760 = vmatprep.subr.mxu0 0.0
          %761 = vmatpush2.msra.mxu0 0.0
          %762 = vmatprep.subr.mxu0 0.0
          %763 = vmatpush2.msra.mxu0 0.0
          %764 = vmatprep.subr.mxu0 0.0
          %765 = vmatpush2.msra.mxu0 0.0
          %766 = vmatprep.subr.mxu0 0.0
          %767 = vmatpush2.msra.mxu0 0.0
          %768 = vmatprep.subr.mxu0 0.0
          %769 = vmatpush2.msra.mxu0 0.0
          %770 = vmatprep.subr.mxu0 0.0
          %771 = vmatpush2.msra.mxu0 0.0
          %772 = vmatprep.subr.mxu0 0.0
          %773 = vmatpush2.msra.mxu0 0.0
          %774 = vmatprep.subr.mxu0 0.0
          %775 = vmatpush2.msra.mxu0 0.0
          %776 = vmatprep.mubr.f32.mxu0 0.0
          %777 = vmatmul.mubr.f32.gmra.mxu0 %v710
          %v778 = vpop.f32.mrf.mxu0
          %v779 = vadd.f32 0.0, %v778
          %v780 = vpop.f32.mrf.mxu0
          %781 = vdwg.mxu0
          %v782 = vadd.f32 %v708, %v779
          %783 = vst [vmem:[#allocation5] sm:$0xff] %v782
          %784 = vst.msk [vmem:[#allocation3] sm:$0xff] %vm700, %v682
        $region68: #{tpu_custom_call.1} parent=39 // pred_fallthru
          _
        // Predicated region
        $region69: #{tpu_custom_call.1} parent=39 // pred_check
          %p785 = pneg %p347
        $region70: #{tpu_custom_call.1} parent=39 // pred_check_branch
          %787 = sbr.rel (%p785) target = $region72
        $region71: #{tpu_custom_call.1} parent=39 // pred_region
          %v788 = vld [vmem:[#allocation4] sm:$0xff]
          %v789 = vrcp.pop %v788
          %v790 = vld [vmem:[#allocation5] sm:$0xff]
          %792 = vset.pattern.permute.xlu0 0
          %793 = vperm.xlu0 %792, %v789
          %v794 = vpop.permute.xlu0 %793
          %v796 = vmul.f32 %v790, %v794
          %797 = vst [vmem:[%s346] sm:$0xff] %v796
        $region72: #{tpu_custom_call.1} parent=39 // pred_fallthru
          _
        %s798 = sand.u32 %s174, 1
        %s799 = scalar_lea.sflag [#allocation8], %s798
        %s800 = sand.u32 %s174, 1
        %s801 = smul.addr %s800, 8
        %s802 = scalar_lea.vmem [#allocation15], %s801
        // Predicated region
        $region73: #{tpu_custom_call.1} parent=39 // pred_check
          %p803 = pneg %p184
        $region74: #{tpu_custom_call.1} parent=39 // pred_check_branch
          %805 = sbr.rel (%p803) target = $region76
        $region75: #{tpu_custom_call.1} parent=39 // pred_region
          %s807 = ssub.s32 128, 128
          %808 = vsyncadd %s799, %s807
          %s809 = sadd.s32 %s32, %s31
          %s810 = smul.addr %s809, 128
          %s811 = scalar_lea.hbm %s5, %s810
          %s813 = sshll.u32 %s802, 4
          %s814 = int_to_ptr.vmem [resolvable:$true] %s813
          %816 = dma.vmem_to_hbm [thread:$0]  %s814, 128, %s811, %s799
        $region76: #{tpu_custom_call.1} parent=39 // pred_fallthru
          _
      $region40: #{tpu_custom_call.1} parent=5 // pred_fallthru
        _
      %p817 = scmp.le.s32.totalorder 2, %s21
      // Predicated region
      $region77: #{tpu_custom_call.1} parent=5 // pred_check
        %p818 = pneg %p817
      $region78: #{tpu_custom_call.1} parent=5 // pred_check_branch
        %820 = sbr.rel (%p818) target = $region80
      $region79: #{tpu_custom_call.1} parent=5 // pred_region
        %s821 = ssub.s32 %s21, 2
        // Predicated region
        $region81: #{tpu_custom_call.1} parent=79 // pred_check
          %p822 = pneg %p190
        $region82: #{tpu_custom_call.1} parent=79 // pred_check_branch
          %824 = sbr.rel (%p822) target = $region84
        $region83: #{tpu_custom_call.1} parent=79 // pred_region
          %s825 = sand.u32 %s175, 1
          %s826 = scalar_lea.sflag [#allocation8], %s825
          %s827 = sand.u32 %s175, 1
          %s828 = smul.addr %s827, 8
          %s829 = scalar_lea.vmem [#allocation15], %s828
          %830 = dma.done %s826, 128
        $region84: #{tpu_custom_call.1} parent=79 // pred_fallthru
          _
      $region80: #{tpu_custom_call.1} parent=5 // pred_fallthru
        _
    $region6: #{tpu_custom_call.1} parent=1 // loop_footer
      %s25 = sadd.s32 1, %s21
    $region7: #{tpu_custom_call.1} parent=1 // loop_footer_branch
      %20 = sbr.rel target = $region3
    $region8: #{tpu_custom_call.1} parent=1 // loop_exit
      _
    %831 = vsyncpa [#allocation7], 1
    %s832 = scalar_lea.sflag [#allocation7], 1
    %833 = vsyncpa %s832, 1
    %834 = vsyncpa [#allocation10], 1
    %s835 = scalar_lea.sflag [#allocation10], 1
    %836 = vsyncpa %s835, 1
    %837 = vsyncpa [#allocation13], 1
    %838 = vsyncpa [#allocation8], 1
    %s839 = scalar_lea.sflag [#allocation8], 1
    %840 = vsyncpa %s839, 1

</llo_original>
